<compile_context>
chip_gen: v7x
topology: tpu7x:2x2x1
jax: 0.10.0
libtpu: 0.0.40
codegen_flags: <defaults>
</compile_context>

<pallas_src>
import functools

import jax
import jax.numpy as jnp
from jax.experimental import pallas as pl
from jax.experimental.pallas import tpu as pltpu


def _round_up(n, m):
    return ((n + m - 1) // m) * m


def _rnn_kernel(x_ref, wih_ref, whh_ref, b_ref, wfc_ref, bfc_ref, out_ref,
                h_ref, *, seq_len, tc, bt, time_padded):
    # x_ref  : (Tc, Bt, Ip) bf16   time-major input chunk
    # wih_ref: (Ip, Hp)     bf16   W_ih^T (zero-padded)
    # whh_ref: (Hp, Hp)     bf16   W_hh^T (zero-padded)
    # b_ref  : (1,  Hp)     f32    b_ih + b_hh (zero-padded)
    # wfc_ref: (Hp, Op)     bf16   W_fc^T (zero-padded)
    # bfc_ref: (1,  Op)     f32    b_fc (zero-padded)
    # out_ref: (Bt, Op)     f32    written only on the last t chunk
    # h_ref  : (Bt, Hp)     f32    carried hidden state (VMEM scratch)
    t = pl.program_id(1)

    @pl.when(t == 0)
    def _():
        h_ref[...] = jnp.zeros_like(h_ref)

    ip = x_ref.shape[-1]
    # Collapse (Tc, Bt) -> rows; Bt is a sublane multiple so this is layout-free.
    x2d = x_ref[...].reshape(tc * bt, ip)
    # Hoisted input projection: one bf16 MXU matmul for the whole chunk.
    xw = (jnp.dot(x2d, wih_ref[...], preferred_element_type=jnp.float32)
          + b_ref[...])                                   # (Tc*Bt, Hp) f32

    whh = whh_ref[...]                                    # (Hp, Hp) bf16
    h = h_ref[...]                                        # (Bt, Hp) f32
    # Tc is small and static -> unrolled recurrence with static, sublane-
    # aligned row slices of xw; the chunk boundary bounds live ranges.
    for tt in range(tc):
        pre = xw[tt * bt:(tt + 1) * bt, :] + jnp.dot(
            h.astype(whh.dtype), whh, preferred_element_type=jnp.float32)
        h_new = jnp.tanh(pre)
        if time_padded:
            # Skip zero-padded timesteps (only possible in the last chunk).
            h = jnp.where(t * tc + tt < seq_len, h_new, h)
        else:
            h = h_new
    h_ref[...] = h

    @pl.when(t == pl.num_programs(1) - 1)
    def _():
        # fc head on the final hidden state: out = h_T @ W_fc^T + b_fc
        out_ref[...] = (jnp.dot(h.astype(wfc_ref.dtype), wfc_ref[...],
                                preferred_element_type=jnp.float32)
                        + bfc_ref[...])


def prepare_params(w_ih, w_hh, b_ih, b_hh, w_fc, b_fc, dtype=jnp.bfloat16):
    """One-time (model-init) weight prep: transpose, zero-pad to lane-dense
    (multiples of 128) shapes, cast matmul operands to bf16.  Zero padding is
    exact: padded hidden units get 0 pre-activation contributions."""
    H, I = w_ih.shape
    O = w_fc.shape[0]
    Ip, Hp, Op = _round_up(I, 128), _round_up(H, 128), _round_up(O, 128)

    wih_p = jnp.zeros((Ip, Hp), dtype).at[:I, :H].set(
        jnp.asarray(w_ih, jnp.float32).T.astype(dtype))
    whh_p = jnp.zeros((Hp, Hp), dtype).at[:H, :H].set(
        jnp.asarray(w_hh, jnp.float32).T.astype(dtype))
    b_p = jnp.zeros((1, Hp), jnp.float32).at[0, :H].set(
        jnp.asarray(b_ih, jnp.float32) + jnp.asarray(b_hh, jnp.float32))
    wfc_p = jnp.zeros((Hp, Op), dtype).at[:H, :O].set(
        jnp.asarray(w_fc, jnp.float32).T.astype(dtype))
    bfc_p = jnp.zeros((1, Op), jnp.float32).at[0, :O].set(
        jnp.asarray(b_fc, jnp.float32))
    return wih_p, whh_p, b_p, wfc_p, bfc_p


_TC_MAX = 32    # timesteps streamed per chunk
_BT_MAX = 256   # batch rows per tile (2nd TensorCore on v7x once nb >= 2)


@jax.jit
def rnn_regression_forward(x, params):
    """x: (B, T, I) float32.  params: output of prepare_params()."""
    wih_p, whh_p, b_p, wfc_p, bfc_p = params
    B, T, I = x.shape
    Ip, Hp = wih_p.shape
    Op = wfc_p.shape[1]

    Bt = min(_round_up(max(B, 8), 8), _BT_MAX)      # sublane-aligned batch tile
    Bp = _round_up(max(B, 8), Bt)
    nb = Bp // Bt
    Tc = min(T, _TC_MAX)                            # timesteps per chunk
    Tp = _round_up(T, Tc)
    nt = Tp // Tc

    # Single fused transpose + cast + pad to a time-major bf16 slab
    # (Tp, Bp, Ip); no separate scatter/reshape ops in the per-call path.
    x_tm = jnp.pad(jnp.transpose(x, (1, 0, 2)).astype(jnp.bfloat16),
                   ((0, Tp - T), (0, Bp - B), (0, Ip - I)))

    kernel = functools.partial(_rnn_kernel, seq_len=T, tc=Tc, bt=Bt,
                               time_padded=(Tp > T))

    out_p = pl.pallas_call(
        kernel,
        out_shape=jax.ShapeDtypeStruct((Bp, Op), jnp.float32),
        grid_spec=pltpu.PrefetchScalarGridSpec(
            num_scalar_prefetch=0,
            grid=(nb, nt),
            in_specs=[
                # Streamed x chunk (double-buffered by the pipeline).
                pl.BlockSpec((Tc, Bt, Ip), lambda b, t: (t, b, 0)),
                # Weights: constant block index -> DMA'd once, VMEM-resident.
                pl.BlockSpec((Ip, Hp), lambda b, t: (0, 0)),
                pl.BlockSpec((Hp, Hp), lambda b, t: (0, 0)),
                pl.BlockSpec((1, Hp), lambda b, t: (0, 0)),
                pl.BlockSpec((Hp, Op), lambda b, t: (0, 0)),
                pl.BlockSpec((1, Op), lambda b, t: (0, 0)),
            ],
            out_specs=pl.BlockSpec((Bt, Op), lambda b, t: (b, 0)),
            scratch_shapes=[pltpu.VMEM((Bt, Hp), jnp.float32)],
        ),
        compiler_params=pltpu.CompilerParams(
            dimension_semantics=("parallel", "arbitrary")),
    )(x_tm, wih_p, whh_p, b_p, wfc_p, bfc_p)

    return out_p[:B, :O]


def reference_forward(x, w_ih, w_hh, b_ih, b_hh, w_fc, b_fc):
    """Pure-JAX f32 reference mirroring torch.nn.RNN (tanh) + Linear."""
    B, T, I = x.shape
    H = w_hh.shape[0]
    h = jnp.zeros((B, H), jnp.float32)
    for t in range(T):
        h = jnp.tanh(x[:, t, :] @ w_ih.T + b_ih + h @ w_hh.T + b_hh)
    return h @ w_fc.T + b_fc


if __name__ == "__main__":
    # Small shapes consistent with the module: batch=2, seq=8, input=16,
    # hidden=64, num_output=4.
    B, T, I, H, O = 2, 8, 16, 64, 4

    key = jax.random.PRNGKey(0)
    kx, k1, k2, k3, k4, k5, k6 = jax.random.split(key, 7)

    # Deterministic parameter init (uniform(-1/sqrt(H), 1/sqrt(H)) like PyTorch).
    s = 1.0 / jnp.sqrt(jnp.float32(H))
    x = jax.random.normal(kx, (B, T, I), jnp.float32)
    w_ih = jax.random.uniform(k1, (H, I), jnp.float32, -s, s)
    w_hh = jax.random.uniform(k2, (H, H), jnp.float32, -s, s)
    b_ih = jax.random.uniform(k3, (H,), jnp.float32, -s, s)
    b_hh = jax.random.uniform(k4, (H,), jnp.float32, -s, s)
    w_fc = jax.random.uniform(k5, (O, H), jnp.float32, -s, s)
    b_fc = jax.random.uniform(k6, (O,), jnp.float32, -s, s)

    # One-time weight prep (model init); excluded from the per-call path.
    params = prepare_params(w_ih, w_hh, b_ih, b_hh, w_fc, b_fc)
    params = jax.block_until_ready(params)

    out = rnn_regression_forward(x, params)
    out = jax.block_until_ready(out)

    ref = reference_forward(x, w_ih, w_hh, b_ih, b_hh, w_fc, b_fc)
    assert out.shape == (B, O), out.shape
    # bf16 matmul operands (f32 accumulation) -> relaxed tolerance vs f32 ref.
    assert jnp.allclose(out, ref, atol=2e-2, rtol=2e-2), (out, ref)

    print("KERNEL_OK")
</pallas_src>

<mosaic_0001>
module attributes {stable_mosaic.version = 11 : i64} {
  func.func @_rnn_kernel(%arg0: i32, %arg1: i32, %arg2: memref<8x8x128xbf16, #tpu.memory_space<vmem>>, %arg3: memref<128x128xbf16, #tpu.memory_space<vmem>>, %arg4: memref<128x128xbf16, #tpu.memory_space<vmem>>, %arg5: memref<1x128xf32, #tpu.memory_space<vmem>>, %arg6: memref<128x128xbf16, #tpu.memory_space<vmem>>, %arg7: memref<1x128xf32, #tpu.memory_space<vmem>>, %arg8: memref<8x128xf32, #tpu.memory_space<vmem>>, %arg9: memref<8x128xf32, #tpu.memory_space<vmem>>) attributes {dimension_semantics = [#tpu.dimension_semantics<parallel>, #tpu.dimension_semantics<arbitrary>], iteration_bounds = array<i64: 1, 1>, scalar_prefetch = 0 : i64, scratch_operands = 1 : i64, tpu.core_type = #tpu.core_type<tc>, window_params = [{transform_indices = @transform_0, window_bounds = array<i64: 8, 8, 128>}, {pipeline_mode = #tpu.pipeline_mode<synchronous>, transform_indices = @transform_1, window_bounds = array<i64: 128, 128>}, {pipeline_mode = #tpu.pipeline_mode<synchronous>, transform_indices = @transform_2, window_bounds = array<i64: 128, 128>}, {pipeline_mode = #tpu.pipeline_mode<synchronous>, transform_indices = @transform_3, window_bounds = array<i64: 1, 128>}, {pipeline_mode = #tpu.pipeline_mode<synchronous>, transform_indices = @transform_4, window_bounds = array<i64: 128, 128>}, {pipeline_mode = #tpu.pipeline_mode<synchronous>, transform_indices = @transform_5, window_bounds = array<i64: 1, 128>}, {transform_indices = @transform_6, window_bounds = array<i64: 8, 128>}]} {
    %c0_i32 = arith.constant 0 : i32
    %0 = arith.cmpi eq, %arg1, %c0_i32 : i32
    %1 = arith.extui %0 : i1 to i32
    %c0_i32_0 = arith.constant 0 : i32
    %2 = arith.cmpi ne, %1, %c0_i32_0 : i32
    scf.if %2 {
      %cst_23 = arith.constant 0.000000e+00 : f32
      %56 = vector.broadcast %cst_23 : f32 to vector<8x128xf32>
      %c0_24 = arith.constant 0 : index
      %c0_25 = arith.constant 0 : index
      %57 = vector.load %arg9[%c0_24, %c0_25] : memref<8x128xf32, #tpu.memory_space<vmem>>, vector<8x128xf32>
      tpu.vector_store %arg9[%c0_24, %c0_25], %56 {strides = array<i32>} : memref<8x128xf32, #tpu.memory_space<vmem>>, vector<8x128xf32>,
    } else {
    }
    %c0 = arith.constant 0 : index
    %c0_1 = arith.constant 0 : index
    %c0_2 = arith.constant 0 : index
    %3 = vector.load %arg2[%c0, %c0_1, %c0_2] : memref<8x8x128xbf16, #tpu.memory_space<vmem>>, vector<8x8x128xbf16>
    %4 = vector.shape_cast %3 : vector<8x8x128xbf16> to vector<64x128xbf16>
    %c0_3 = arith.constant 0 : index
    %c0_4 = arith.constant 0 : index
    %5 = vector.load %arg3[%c0_3, %c0_4] : memref<128x128xbf16, #tpu.memory_space<vmem>>, vector<128x128xbf16>
    %cst = arith.constant dense<0.000000e+00> : vector<64x128xf32>
    %6 = tpu.matmul %4, %5, %cst {dimension_numbers = #tpu.dot_dimension_numbers<[1], [0], [0], [1], [0, 0, 1, 1], [], []>} : vector<64x128xbf16>, vector<128x128xbf16>, vector<64x128xf32> -> vector<64x128xf32>
    %c0_5 = arith.constant 0 : index
    %c0_6 = arith.constant 0 : index
    %7 = vector.load %arg5[%c0_5, %c0_6] : memref<1x128xf32, #tpu.memory_space<vmem>>, vector<1x128xf32>
    %8 = vector.broadcast %7 : vector<1x128xf32> to vector<64x128xf32>
    %9 = arith.addf %6, %8 : vector<64x128xf32>
    %c0_7 = arith.constant 0 : index
    %c0_8 = arith.constant 0 : index
    %10 = vector.load %arg4[%c0_7, %c0_8] : memref<128x128xbf16, #tpu.memory_space<vmem>>, vector<128x128xbf16>
    %c0_9 = arith.constant 0 : index
    %c0_10 = arith.constant 0 : index
    %11 = vector.load %arg9[%c0_9, %c0_10] : memref<8x128xf32, #tpu.memory_space<vmem>>, vector<8x128xf32>
    %12 = vector.extract_strided_slice %9 {offsets = [0, 0], sizes = [8, 128], strides = [1, 1]} : vector<64x128xf32> to vector<8x128xf32>
    %13 = arith.truncf %11 : vector<8x128xf32> to vector<8x128xbf16>
    %cst_11 = arith.constant dense<0.000000e+00> : vector<8x128xf32>
    %14 = tpu.matmul %13, %10, %cst_11 {dimension_numbers = #tpu.dot_dimension_numbers<[1], [0], [0], [1], [0, 0, 1, 1], [], []>} : vector<8x128xbf16>, vector<128x128xbf16>, vector<8x128xf32> -> vector<8x128xf32>
    %15 = arith.addf %12, %14 : vector<8x128xf32>
    %16 = math.tanh %15 : vector<8x128xf32>
    %17 = vector.extract_strided_slice %9 {offsets = [8, 0], sizes = [8, 128], strides = [1, 1]} : vector<64x128xf32> to vector<8x128xf32>
    %18 = arith.truncf %16 : vector<8x128xf32> to vector<8x128xbf16>
    %cst_12 = arith.constant dense<0.000000e+00> : vector<8x128xf32>
    %19 = tpu.matmul %18, %10, %cst_12 {dimension_numbers = #tpu.dot_dimension_numbers<[1], [0], [0], [1], [0, 0, 1, 1], [], []>} : vector<8x128xbf16>, vector<128x128xbf16>, vector<8x128xf32> -> vector<8x128xf32>
    %20 = arith.addf %17, %19 : vector<8x128xf32>
    %21 = math.tanh %20 : vector<8x128xf32>
    %22 = vector.extract_strided_slice %9 {offsets = [16, 0], sizes = [8, 128], strides = [1, 1]} : vector<64x128xf32> to vector<8x128xf32>
    %23 = arith.truncf %21 : vector<8x128xf32> to vector<8x128xbf16>
    %cst_13 = arith.constant dense<0.000000e+00> : vector<8x128xf32>
    %24 = tpu.matmul %23, %10, %cst_13 {dimension_numbers = #tpu.dot_dimension_numbers<[1], [0], [0], [1], [0, 0, 1, 1], [], []>} : vector<8x128xbf16>, vector<128x128xbf16>, vector<8x128xf32> -> vector<8x128xf32>
    %25 = arith.addf %22, %24 : vector<8x128xf32>
    %26 = math.tanh %25 : vector<8x128xf32>
    %27 = vector.extract_strided_slice %9 {offsets = [24, 0], sizes = [8, 128], strides = [1, 1]} : vector<64x128xf32> to vector<8x128xf32>
    %28 = arith.truncf %26 : vector<8x128xf32> to vector<8x128xbf16>
    %cst_14 = arith.constant dense<0.000000e+00> : vector<8x128xf32>
    %29 = tpu.matmul %28, %10, %cst_14 {dimension_numbers = #tpu.dot_dimension_numbers<[1], [0], [0], [1], [0, 0, 1, 1], [], []>} : vector<8x128xbf16>, vector<128x128xbf16>, vector<8x128xf32> -> vector<8x128xf32>
    %30 = arith.addf %27, %29 : vector<8x128xf32>
    %31 = math.tanh %30 : vector<8x128xf32>
    %32 = vector.extract_strided_slice %9 {offsets = [32, 0], sizes = [8, 128], strides = [1, 1]} : vector<64x128xf32> to vector<8x128xf32>
    %33 = arith.truncf %31 : vector<8x128xf32> to vector<8x128xbf16>
    %cst_15 = arith.constant dense<0.000000e+00> : vector<8x128xf32>
    %34 = tpu.matmul %33, %10, %cst_15 {dimension_numbers = #tpu.dot_dimension_numbers<[1], [0], [0], [1], [0, 0, 1, 1], [], []>} : vector<8x128xbf16>, vector<128x128xbf16>, vector<8x128xf32> -> vector<8x128xf32>
    %35 = arith.addf %32, %34 : vector<8x128xf32>
    %36 = math.tanh %35 : vector<8x128xf32>
    %37 = vector.extract_strided_slice %9 {offsets = [40, 0], sizes = [8, 128], strides = [1, 1]} : vector<64x128xf32> to vector<8x128xf32>
    %38 = arith.truncf %36 : vector<8x128xf32> to vector<8x128xbf16>
    %cst_16 = arith.constant dense<0.000000e+00> : vector<8x128xf32>
    %39 = tpu.matmul %38, %10, %cst_16 {dimension_numbers = #tpu.dot_dimension_numbers<[1], [0], [0], [1], [0, 0, 1, 1], [], []>} : vector<8x128xbf16>, vector<128x128xbf16>, vector<8x128xf32> -> vector<8x128xf32>
    %40 = arith.addf %37, %39 : vector<8x128xf32>
    %41 = math.tanh %40 : vector<8x128xf32>
    %42 = vector.extract_strided_slice %9 {offsets = [48, 0], sizes = [8, 128], strides = [1, 1]} : vector<64x128xf32> to vector<8x128xf32>
    %43 = arith.truncf %41 : vector<8x128xf32> to vector<8x128xbf16>
    %cst_17 = arith.constant dense<0.000000e+00> : vector<8x128xf32>
    %44 = tpu.matmul %43, %10, %cst_17 {dimension_numbers = #tpu.dot_dimension_numbers<[1], [0], [0], [1], [0, 0, 1, 1], [], []>} : vector<8x128xbf16>, vector<128x128xbf16>, vector<8x128xf32> -> vector<8x128xf32>
    %45 = arith.addf %42, %44 : vector<8x128xf32>
    %46 = math.tanh %45 : vector<8x128xf32>
    %47 = vector.extract_strided_slice %9 {offsets = [56, 0], sizes = [8, 128], strides = [1, 1]} : vector<64x128xf32> to vector<8x128xf32>
    %48 = arith.truncf %46 : vector<8x128xf32> to vector<8x128xbf16>
    %cst_18 = arith.constant dense<0.000000e+00> : vector<8x128xf32>
    %49 = tpu.matmul %48, %10, %cst_18 {dimension_numbers = #tpu.dot_dimension_numbers<[1], [0], [0], [1], [0, 0, 1, 1], [], []>} : vector<8x128xbf16>, vector<128x128xbf16>, vector<8x128xf32> -> vector<8x128xf32>
    %50 = arith.addf %47, %49 : vector<8x128xf32>
    %51 = math.tanh %50 : vector<8x128xf32>
    %c0_19 = arith.constant 0 : index
    %c0_20 = arith.constant 0 : index
    %52 = vector.load %arg9[%c0_19, %c0_20] : memref<8x128xf32, #tpu.memory_space<vmem>>, vector<8x128xf32>
    tpu.vector_store %arg9[%c0_19, %c0_20], %51 {strides = array<i32>} : memref<8x128xf32, #tpu.memory_space<vmem>>, vector<8x128xf32>,
    %c0_i32_21 = arith.constant 0 : i32
    %53 = arith.cmpi eq, %arg1, %c0_i32_21 : i32
    %54 = arith.extui %53 : i1 to i32
    %c0_i32_22 = arith.constant 0 : i32
    %55 = arith.cmpi ne, %54, %c0_i32_22 : i32
    scf.if %55 {
      %56 = arith.truncf %51 : vector<8x128xf32> to vector<8x128xbf16>
      %c0_23 = arith.constant 0 : index
      %c0_24 = arith.constant 0 : index
      %57 = vector.load %arg6[%c0_23, %c0_24] : memref<128x128xbf16, #tpu.memory_space<vmem>>, vector<128x128xbf16>
      %cst_25 = arith.constant dense<0.000000e+00> : vector<8x128xf32>
      %58 = tpu.matmul %56, %57, %cst_25 {dimension_numbers = #tpu.dot_dimension_numbers<[1], [0], [0], [1], [0, 0, 1, 1], [], []>} : vector<8x128xbf16>, vector<128x128xbf16>, vector<8x128xf32> -> vector<8x128xf32>
      %c0_26 = arith.constant 0 : index
      %c0_27 = arith.constant 0 : index
      %59 = vector.load %arg7[%c0_26, %c0_27] : memref<1x128xf32, #tpu.memory_space<vmem>>, vector<1x128xf32>
      %60 = vector.broadcast %59 : vector<1x128xf32> to vector<8x128xf32>
      %61 = arith.addf %58, %60 : vector<8x128xf32>
      %c0_28 = arith.constant 0 : index
      %c0_29 = arith.constant 0 : index
      %62 = vector.load %arg8[%c0_28, %c0_29] : memref<8x128xf32, #tpu.memory_space<vmem>>, vector<8x128xf32>
      tpu.vector_store %arg8[%c0_28, %c0_29], %61 {strides = array<i32>} : memref<8x128xf32, #tpu.memory_space<vmem>>, vector<8x128xf32>,
    } else {
    }
    return
  }
  func.func @transform_0(%arg0: i32, %arg1: i32) -> (i32, i32, i32) {
    %c0_i32 = arith.constant 0 : i32
    %c0_i32_0 = arith.constant 0 : i32
    return %arg1, %arg0, %c0_i32 : i32, i32, i32
  }
  func.func @transform_1(%arg0: i32, %arg1: i32) -> (i32, i32) {
    %c0_i32 = arith.constant 0 : i32
    %c0_i32_0 = arith.constant 0 : i32
    %c0_i32_1 = arith.constant 0 : i32
    return %c0_i32, %c0_i32_0 : i32, i32
  }
  func.func @transform_2(%arg0: i32, %arg1: i32) -> (i32, i32) {
    %c0_i32 = arith.constant 0 : i32
    %c0_i32_0 = arith.constant 0 : i32
    %c0_i32_1 = arith.constant 0 : i32
    return %c0_i32, %c0_i32_0 : i32, i32
  }
  func.func @transform_3(%arg0: i32, %arg1: i32) -> (i32, i32) {
    %c0_i32 = arith.constant 0 : i32
    %c0_i32_0 = arith.constant 0 : i32
    %c0_i32_1 = arith.constant 0 : i32
    return %c0_i32, %c0_i32_0 : i32, i32
  }
  func.func @transform_4(%arg0: i32, %arg1: i32) -> (i32, i32) {
    %c0_i32 = arith.constant 0 : i32
    %c0_i32_0 = arith.constant 0 : i32
    %c0_i32_1 = arith.constant 0 : i32
    return %c0_i32, %c0_i32_0 : i32, i32
  }
  func.func @transform_5(%arg0: i32, %arg1: i32) -> (i32, i32) {
    %c0_i32 = arith.constant 0 : i32
    %c0_i32_0 = arith.constant 0 : i32
    %c0_i32_1 = arith.constant 0 : i32
    return %c0_i32, %c0_i32_0 : i32, i32
  }
  func.func @transform_6(%arg0: i32, %arg1: i32) -> (i32, i32) {
    %c0_i32 = arith.constant 0 : i32
    %c0_i32_0 = arith.constant 0 : i32
    return %arg0, %c0_i32 : i32, i32
  }
}

</mosaic_0001>

<llo_original>
// kernel: rnn_regression_forward.1
$region0: #{rnn_regression_forward.1}
  #allocation0 [shape = 'u32[]', space=smem, size = 0x4, offset = 0x4, fixed_abs, tag = 'smem constant byte address 0x4 - core index']
  #allocation1 [shape = 'u32[144,128]{1,0:T(1,128)}', space=vmem, size = 0x12000, scoped, tag = 'internal scratch']
  #allocation2 [shape = 'f32[8,128]{1,0:T(8,128)}', space=vmem, size = 0x1000, scoped, tag = 'scratch operand']
  %s0 = inlined_call_operand.vmem [shape: bf16[8,8,128], index: 0, kind: input, shape index: {}]
  %s1 = inlined_call_operand.vmem [shape: bf16[128,128], index: 1, kind: input, shape index: {}]
  %s2 = inlined_call_operand.hbm [shape: bf16[128,128], index: 2, kind: input, shape index: {}]
  %s3 = inlined_call_operand.vmem [shape: f32[1,128], index: 3, kind: input, shape index: {}]
  %s4 = inlined_call_operand.hbm [shape: bf16[128,128], index: 4, kind: input, shape index: {}]
  %s5 = inlined_call_operand.vmem [shape: f32[1,128], index: 5, kind: input, shape index: {}]
  %s6 = inlined_call_operand.vmem [shape: f32[8,128], index: 6, kind: output, shape index: {}]
  %s7 = sld [smem:[#allocation0]]
  $region50: #{rnn_regression_forward.1} parent=0
    _
  %s9 = ssub.s32 1, %s7
  %s10 = scalar_select 0, %s9, %s7
  $region1: #{rnn_regression_forward.1} parent=0
    #allocation3 [shape = 'u8[32768]{0}', space=vmem, size = 0x8000, scoped, tag = 'input window, operand 2, single buffered']
    #allocation4 [shape = 's32[1]{0}', space=sflag, size = 0x4, scoped, tag = 'scoped memory for rnn_regression_forward.1']
    #allocation5 [shape = 'u8[32768]{0}', space=vmem, size = 0x8000, scoped, tag = 'input window, operand 4, single buffered']
    #allocation6 [shape = 's32[1]{0}', space=sflag, size = 0x4, scoped, tag = 'scoped memory for rnn_regression_forward.1']
    %11 = vsyncpa [#allocation4], 0
    %12 = vsyncpa [#allocation6], 0
    // Predicated region
    $region2: #{rnn_regression_forward.1} parent=1 // pred_check
      _
    $region3: #{rnn_regression_forward.1} parent=1 // pred_check_branch
      %14 = sbr.rel (0) target = $region5
    $region4: #{rnn_regression_forward.1} parent=1 // pred_region
      _
    $region5: #{rnn_regression_forward.1} parent=1 // pred_fallthru
      _
    // Predicated region
    $region6: #{rnn_regression_forward.1} parent=1 // pred_check
      _
    $region7: #{rnn_regression_forward.1} parent=1 // pred_check_branch
      %16 = sbr.rel (0) target = $region9
    $region8: #{rnn_regression_forward.1} parent=1 // pred_region
      _
    $region9: #{rnn_regression_forward.1} parent=1 // pred_fallthru
      _
    // Predicated region
    $region10: #{rnn_regression_forward.1} parent=1 // pred_check
      _
    $region11: #{rnn_regression_forward.1} parent=1 // pred_check_branch
      %18 = sbr.rel (0) target = $region13
    $region12: #{rnn_regression_forward.1} parent=1 // pred_region
      %s20 = ssub.s32 1024, 1024
      %21 = vsyncadd [#allocation4], %s20
      %s22 = sshll.u32 [#allocation3], 4
      %s23 = int_to_ptr.vmem [resolvable:$true] %s22
      %28 = dma.hbm_to_vmem [thread:$0]  %s2, 1024, %s23, [#allocation4], 64, 64, 4
    $region13: #{rnn_regression_forward.1} parent=1 // pred_fallthru
      _
    // Predicated region
    $region14: #{rnn_regression_forward.1} parent=1 // pred_check
      _
    $region15: #{rnn_regression_forward.1} parent=1 // pred_check_branch
      %30 = sbr.rel (0) target = $region17
    $region16: #{rnn_regression_forward.1} parent=1 // pred_region
      _
    $region17: #{rnn_regression_forward.1} parent=1 // pred_fallthru
      _
    // Predicated region
    $region18: #{rnn_regression_forward.1} parent=1 // pred_check
      _
    $region19: #{rnn_regression_forward.1} parent=1 // pred_check_branch
      %32 = sbr.rel (0) target = $region21
    $region20: #{rnn_regression_forward.1} parent=1 // pred_region
      %s34 = ssub.s32 1024, 1024
      %35 = vsyncadd [#allocation6], %s34
      %s36 = sshll.u32 [#allocation5], 4
      %s37 = int_to_ptr.vmem [resolvable:$true] %s36
      %42 = dma.hbm_to_vmem [thread:$0]  %s4, 1024, %s37, [#allocation6], 64, 64, 4
    $region21: #{rnn_regression_forward.1} parent=1 // pred_fallthru
      _
    // Predicated region
    $region22: #{rnn_regression_forward.1} parent=1 // pred_check
      _
    $region23: #{rnn_regression_forward.1} parent=1 // pred_check_branch
      %44 = sbr.rel (0) target = $region25
    $region24: #{rnn_regression_forward.1} parent=1 // pred_region
      _
    $region25: #{rnn_regression_forward.1} parent=1 // pred_fallthru
      _
    // Predicated region
    $region26: #{rnn_regression_forward.1} parent=1 // pred_check
      _
    $region27: #{rnn_regression_forward.1} parent=1 // pred_check_branch
      %46 = sbr.rel (0) target = $region29
    $region28: #{rnn_regression_forward.1} parent=1 // pred_region
      %47 = dma.done [#allocation4], 1024
    $region29: #{rnn_regression_forward.1} parent=1 // pred_fallthru
      _
    // Predicated region
    $region30: #{rnn_regression_forward.1} parent=1 // pred_check
      _
    $region31: #{rnn_regression_forward.1} parent=1 // pred_check_branch
      %49 = sbr.rel (0) target = $region33
    $region32: #{rnn_regression_forward.1} parent=1 // pred_region
      %50 = dma.done [#allocation6], 1024
    $region33: #{rnn_regression_forward.1} parent=1 // pred_fallthru
      _
    %p52 = scmp.eq.s32.totalorder 0, 0
    // Predicated region
    $region34: #{rnn_regression_forward.1} parent=1 // pred_check
      %p53 = pneg %p52
    $region35: #{rnn_regression_forward.1} parent=1 // pred_check_branch
      %55 = sbr.rel (%p53) target = $region37
    $region36: #{rnn_regression_forward.1} parent=1 // pred_region
      %56 = vst [vmem:[#allocation2] sm:$0xff] 0.0
    $region37: #{rnn_regression_forward.1} parent=1 // pred_fallthru
      _
    %v57 = vld [vmem:[%s0] sm:$0xf]
    %v58 = vld [vmem:[%s0 + $0x4] sm:$0xf]
    %v59 = vld [vmem:[%s0 + $0x8] sm:$0xf]
    %v60 = vld [vmem:[%s0 + $0xc] sm:$0xf]
    %v61 = vld [vmem:[%s0 + $0x10] sm:$0xf]
    %v62 = vld [vmem:[%s0 + $0x14] sm:$0xf]
    %v63 = vld [vmem:[%s0 + $0x18] sm:$0xf]
    %v64 = vld [vmem:[%s0 + $0x1c] sm:$0xf]
    %v65 = vld [vmem:[%s1] sm:$0xf]
    %v66 = vld [vmem:[%s1 + $0x4] sm:$0xf]
    %v67 = vld [vmem:[%s1 + $0x8] sm:$0xf]
    %v68 = vld [vmem:[%s1 + $0xc] sm:$0xf]
    %v69 = vld [vmem:[%s1 + $0x10] sm:$0xf]
    %v70 = vld [vmem:[%s1 + $0x14] sm:$0xf]
    %v71 = vld [vmem:[%s1 + $0x18] sm:$0xf]
    %v72 = vld [vmem:[%s1 + $0x1c] sm:$0xf]
    %v73 = vld [vmem:[%s1 + $0x20] sm:$0xf]
    %v74 = vld [vmem:[%s1 + $0x24] sm:$0xf]
    %v75 = vld [vmem:[%s1 + $0x28] sm:$0xf]
    %v76 = vld [vmem:[%s1 + $0x2c] sm:$0xf]
    %v77 = vld [vmem:[%s1 + $0x30] sm:$0xf]
    %v78 = vld [vmem:[%s1 + $0x34] sm:$0xf]
    %v79 = vld [vmem:[%s1 + $0x38] sm:$0xf]
    %v80 = vld [vmem:[%s1 + $0x3c] sm:$0xf]
    %v81 = vld [vmem:[%s3] sm:$0x1]
    %v83 = vlaneseq
    %v84 = vshrl.u32 %v83, 7
    %v85 = vsub.s32 0, %v84
    %v86 = vrot.slane %v81, %v85
    %v96 = vunpack.c.l.b16 %v57
    %v97 = vunpack.c.l.b16 %v58
    %v98 = vunpack.c.l.b16 %v59
    %v99 = vunpack.c.l.b16 %v60
    %v100 = vunpack.c.l.b16 %v61
    %v101 = vunpack.c.l.b16 %v62
    %v102 = vunpack.c.l.b16 %v63
    %v103 = vunpack.c.l.b16 %v64
    %v104 = vpack.c.b16 %v97, %v96
    %v105 = vpack.c.b16 %v99, %v98
    %v106 = vpack.c.b16 %v101, %v100
    %v107 = vpack.c.b16 %v103, %v102
    %v128 = vunpack.c.l.b16 %v65
    %v129 = vunpack.c.l.b16 %v66
    %v130 = vunpack.c.l.b16 %v67
    %v131 = vunpack.c.l.b16 %v68
    %v132 = vunpack.c.l.b16 %v69
    %v133 = vunpack.c.l.b16 %v70
    %v134 = vunpack.c.l.b16 %v71
    %v135 = vunpack.c.l.b16 %v72
    %v136 = vunpack.c.l.b16 %v73
    %v137 = vunpack.c.l.b16 %v74
    %v138 = vunpack.c.l.b16 %v75
    %v139 = vunpack.c.l.b16 %v76
    %v140 = vunpack.c.l.b16 %v77
    %v141 = vunpack.c.l.b16 %v78
    %v142 = vunpack.c.l.b16 %v79
    %v143 = vunpack.c.l.b16 %v80
    %v144 = vpack.c.b16 %v129, %v128
    %v145 = vpack.c.b16 %v131, %v130
    %v146 = vpack.c.b16 %v133, %v132
    %v147 = vpack.c.b16 %v135, %v134
    %v148 = vpack.c.b16 %v137, %v136
    %v149 = vpack.c.b16 %v139, %v138
    %v150 = vpack.c.b16 %v141, %v140
    %v151 = vpack.c.b16 %v143, %v142
    %160 = vmatprep.subr.bf16.mxu0 0
    %161 = vmatpush1.bf16.msra.mxu0 %v144
    %162 = vmatprep.subr.bf16.mxu0 0
    %163 = vmatpush1.bf16.msra.mxu0 %v145
    %164 = vmatprep.subr.bf16.mxu0 0
    %165 = vmatpush1.bf16.msra.mxu0 %v146
    %166 = vmatprep.subr.bf16.mxu0 0
    %167 = vmatpush1.bf16.msra.mxu0 %v147
    %168 = vmatprep.subr.bf16.mxu0 0
    %169 = vmatpush1.bf16.msra.mxu0 %v148
    %170 = vmatprep.subr.bf16.mxu0 0
    %171 = vmatpush1.bf16.msra.mxu0 %v149
    %172 = vmatprep.subr.bf16.mxu0 0
    %173 = vmatpush1.bf16.msra.mxu0 %v150
    %174 = vmatprep.subr.bf16.mxu0 0
    %175 = vmatpush1.bf16.msra.mxu0 %v151
    %176 = vmatprep.subr.bf16.mxu0 0
    %177 = vmatpush1.bf16.msra.mxu0 0
    %178 = vmatprep.subr.bf16.mxu0 0
    %179 = vmatpush1.bf16.msra.mxu0 0
    %180 = vmatprep.subr.bf16.mxu0 0
    %181 = vmatpush1.bf16.msra.mxu0 0
    %182 = vmatprep.subr.bf16.mxu0 0
    %183 = vmatpush1.bf16.msra.mxu0 0
    %184 = vmatprep.subr.bf16.mxu0 0
    %185 = vmatpush1.bf16.msra.mxu0 0
    %186 = vmatprep.subr.bf16.mxu0 0
    %187 = vmatpush1.bf16.msra.mxu0 0
    %188 = vmatprep.subr.bf16.mxu0 0
    %189 = vmatpush1.bf16.msra.mxu0 0
    %190 = vmatprep.subr.bf16.mxu0 0
    %191 = vmatpush1.bf16.msra.mxu0 0
    %192 = vmatprep.mubr.bf16.mxu0 0
    %193 = vmatmul.mubr.bf16.gmra.mrb[0].mxu0 %v104
    %v194 = vpop.f32.mrb[0].mxu0
    %v195 = vadd.f32 %v86, %v194
    %v196 = vpop.f32.mrb[0].mxu0
    %v197 = vpop.f32.mrb[0].mxu0
    %v198 = vadd.f32 %v86, %v197
    %v199 = vpop.f32.mrb[0].mxu0
    %200 = vmatprep.mubr.bf16.mxu0 0
    %201 = vmatmul.mubr.bf16.gmra.mrb[0].mxu0 %v105
    %v202 = vpop.f32.mrb[0].mxu0
    %v203 = vadd.f32 %v86, %v202
    %v204 = vpop.f32.mrb[0].mxu0
    %v205 = vpop.f32.mrb[0].mxu0
    %v206 = vadd.f32 %v86, %v205
    %v207 = vpop.f32.mrb[0].mxu0
    %208 = vmatprep.mubr.bf16.mxu0 0
    %209 = vmatmul.mubr.bf16.gmra.mrb[0].mxu0 %v106
    %v210 = vpop.f32.mrb[0].mxu0
    %v211 = vadd.f32 %v86, %v210
    %v212 = vpop.f32.mrb[0].mxu0
    %v213 = vpop.f32.mrb[0].mxu0
    %v214 = vadd.f32 %v86, %v213
    %v215 = vpop.f32.mrb[0].mxu0
    %216 = vmatprep.mubr.bf16.mxu0 0
    %217 = vmatmul.mubr.bf16.gmra.mrb[0].mxu0 %v107
    %v218 = vpop.f32.mrb[0].mxu0
    %v219 = vadd.f32 %v86, %v218
    %v220 = vpop.f32.mrb[0].mxu0
    %v221 = vpop.f32.mrb[0].mxu0
    %v222 = vadd.f32 %v86, %v221
    %v223 = vpop.f32.mrb[0].mxu0
    %224 = vdwg.mxu0
    %v225 = vld [vmem:[#allocation3] sm:$0xf]
    %v226 = vld [vmem:[#allocation3 + $0x4] sm:$0xf]
    %v227 = vld [vmem:[#allocation3 + $0x8] sm:$0xf]
    %v228 = vld [vmem:[#allocation3 + $0xc] sm:$0xf]
    %v229 = vld [vmem:[#allocation3 + $0x10] sm:$0xf]
    %v230 = vld [vmem:[#allocation3 + $0x14] sm:$0xf]
    %v231 = vld [vmem:[#allocation3 + $0x18] sm:$0xf]
    %v232 = vld [vmem:[#allocation3 + $0x1c] sm:$0xf]
    %v233 = vld [vmem:[#allocation3 + $0x20] sm:$0xf]
    %v234 = vld [vmem:[#allocation3 + $0x24] sm:$0xf]
    %v235 = vld [vmem:[#allocation3 + $0x28] sm:$0xf]
    %v236 = vld [vmem:[#allocation3 + $0x2c] sm:$0xf]
    %v237 = vld [vmem:[#allocation3 + $0x30] sm:$0xf]
    %v238 = vld [vmem:[#allocation3 + $0x34] sm:$0xf]
    %v239 = vld [vmem:[#allocation3 + $0x38] sm:$0xf]
    %v240 = vld [vmem:[#allocation3 + $0x3c] sm:$0xf]
    %v241 = vld [vmem:[#allocation2] sm:$0xff]
    %v242 = vpack.c.bf16 %v241, %v241
    %v259 = vunpack.c.l.b16 %v225
    %v260 = vunpack.c.l.b16 %v226
    %v261 = vunpack.c.l.b16 %v227
    %v262 = vunpack.c.l.b16 %v228
    %v263 = vunpack.c.l.b16 %v229
    %v264 = vunpack.c.l.b16 %v230
    %v265 = vunpack.c.l.b16 %v231
    %v266 = vunpack.c.l.b16 %v232
    %v267 = vunpack.c.l.b16 %v233
    %v268 = vunpack.c.l.b16 %v234
    %v269 = vunpack.c.l.b16 %v235
    %v270 = vunpack.c.l.b16 %v236
    %v271 = vunpack.c.l.b16 %v237
    %v272 = vunpack.c.l.b16 %v238
    %v273 = vunpack.c.l.b16 %v239
    %v274 = vunpack.c.l.b16 %v240
    %v275 = vpack.c.b16 %v260, %v259
    %v276 = vpack.c.b16 %v262, %v261
    %v277 = vpack.c.b16 %v264, %v263
    %v278 = vpack.c.b16 %v266, %v265
    %v279 = vpack.c.b16 %v268, %v267
    %v280 = vpack.c.b16 %v270, %v269
    %v281 = vpack.c.b16 %v272, %v271
    %v282 = vpack.c.b16 %v274, %v273
    %291 = vmatprep.subr.bf16.mxu0 0
    %292 = vmatpush1.bf16.msra.mxu0 %v275
    %293 = vmatprep.subr.bf16.mxu0 0
    %294 = vmatpush1.bf16.msra.mxu0 %v276
    %295 = vmatprep.subr.bf16.mxu0 0
    %296 = vmatpush1.bf16.msra.mxu0 %v277
    %297 = vmatprep.subr.bf16.mxu0 0
    %298 = vmatpush1.bf16.msra.mxu0 %v278
    %299 = vmatprep.subr.bf16.mxu0 0
    %300 = vmatpush1.bf16.msra.mxu0 %v279
    %301 = vmatprep.subr.bf16.mxu0 0
    %302 = vmatpush1.bf16.msra.mxu0 %v280
    %303 = vmatprep.subr.bf16.mxu0 0
    %304 = vmatpush1.bf16.msra.mxu0 %v281
    %305 = vmatprep.subr.bf16.mxu0 0
    %306 = vmatpush1.bf16.msra.mxu0 %v282
    %307 = vmatprep.subr.bf16.mxu0 0
    %308 = vmatpush1.bf16.msra.mxu0 0
    %309 = vmatprep.subr.bf16.mxu0 0
    %310 = vmatpush1.bf16.msra.mxu0 0
    %311 = vmatprep.subr.bf16.mxu0 0
    %312 = vmatpush1.bf16.msra.mxu0 0
    %313 = vmatprep.subr.bf16.mxu0 0
    %314 = vmatpush1.bf16.msra.mxu0 0
    %315 = vmatprep.subr.bf16.mxu0 0
    %316 = vmatpush1.bf16.msra.mxu0 0
    %317 = vmatprep.subr.bf16.mxu0 0
    %318 = vmatpush1.bf16.msra.mxu0 0
    %319 = vmatprep.subr.bf16.mxu0 0
    %320 = vmatpush1.bf16.msra.mxu0 0
    %321 = vmatprep.subr.bf16.mxu0 0
    %322 = vmatpush1.bf16.msra.mxu0 0
    %323 = vmatprep.mubr.bf16.mxu0 0
    %324 = vmatmul.mubr.bf16.gmra.mrb[0].mxu0 %v242
    %v325 = vpop.f32.mrb[0].mxu0
    %v326 = vadd.f32 0.0, %v325
    %v327 = vpop.f32.mrb[0].mxu0
    %v328 = vpop.f32.mrb[0].mxu0
    %v329 = vpop.f32.mrb[0].mxu0
    %330 = vdwg.mxu0
    %v331 = vadd.f32 %v195, %v326
    %v332 = vtanh.pop %v331
    %v333 = vpack.c.bf16 %v332, %v332
    %334 = vmatprep.subr.bf16.mxu0 0
    %335 = vmatpush1.bf16.msra.mxu0 %v275
    %336 = vmatprep.subr.bf16.mxu0 0
    %337 = vmatpush1.bf16.msra.mxu0 %v276
    %338 = vmatprep.subr.bf16.mxu0 0
    %339 = vmatpush1.bf16.msra.mxu0 %v277
    %340 = vmatprep.subr.bf16.mxu0 0
    %341 = vmatpush1.bf16.msra.mxu0 %v278
    %342 = vmatprep.subr.bf16.mxu0 0
    %343 = vmatpush1.bf16.msra.mxu0 %v279
    %344 = vmatprep.subr.bf16.mxu0 0
    %345 = vmatpush1.bf16.msra.mxu0 %v280
    %346 = vmatprep.subr.bf16.mxu0 0
    %347 = vmatpush1.bf16.msra.mxu0 %v281
    %348 = vmatprep.subr.bf16.mxu0 0
    %349 = vmatpush1.bf16.msra.mxu0 %v282
    %350 = vmatprep.subr.bf16.mxu0 0
    %351 = vmatpush1.bf16.msra.mxu0 0
    %352 = vmatprep.subr.bf16.mxu0 0
    %353 = vmatpush1.bf16.msra.mxu0 0
    %354 = vmatprep.subr.bf16.mxu0 0
    %355 = vmatpush1.bf16.msra.mxu0 0
    %356 = vmatprep.subr.bf16.mxu0 0
    %357 = vmatpush1.bf16.msra.mxu0 0
    %358 = vmatprep.subr.bf16.mxu0 0
    %359 = vmatpush1.bf16.msra.mxu0 0
    %360 = vmatprep.subr.bf16.mxu0 0
    %361 = vmatpush1.bf16.msra.mxu0 0
    %362 = vmatprep.subr.bf16.mxu0 0
    %363 = vmatpush1.bf16.msra.mxu0 0
    %364 = vmatprep.subr.bf16.mxu0 0
    %365 = vmatpush1.bf16.msra.mxu0 0
    %366 = vmatprep.mubr.bf16.mxu0 0
    %367 = vmatmul.mubr.bf16.gmra.mrb[0].mxu0 %v333
    %v368 = vpop.f32.mrb[0].mxu0
    %v369 = vadd.f32 0.0, %v368
    %v370 = vpop.f32.mrb[0].mxu0
    %v371 = vpop.f32.mrb[0].mxu0
    %v372 = vpop.f32.mrb[0].mxu0
    %373 = vdwg.mxu0
    %v374 = vadd.f32 %v198, %v369
    %v375 = vtanh.pop %v374
    %v376 = vpack.c.bf16 %v375, %v375
    %377 = vmatprep.subr.bf16.mxu0 0
    %378 = vmatpush1.bf16.msra.mxu0 %v275
    %379 = vmatprep.subr.bf16.mxu0 0
    %380 = vmatpush1.bf16.msra.mxu0 %v276
    %381 = vmatprep.subr.bf16.mxu0 0
    %382 = vmatpush1.bf16.msra.mxu0 %v277
    %383 = vmatprep.subr.bf16.mxu0 0
    %384 = vmatpush1.bf16.msra.mxu0 %v278
    %385 = vmatprep.subr.bf16.mxu0 0
    %386 = vmatpush1.bf16.msra.mxu0 %v279
    %387 = vmatprep.subr.bf16.mxu0 0
    %388 = vmatpush1.bf16.msra.mxu0 %v280
    %389 = vmatprep.subr.bf16.mxu0 0
    %390 = vmatpush1.bf16.msra.mxu0 %v281
    %391 = vmatprep.subr.bf16.mxu0 0
    %392 = vmatpush1.bf16.msra.mxu0 %v282
    %393 = vmatprep.subr.bf16.mxu0 0
    %394 = vmatpush1.bf16.msra.mxu0 0
    %395 = vmatprep.subr.bf16.mxu0 0
    %396 = vmatpush1.bf16.msra.mxu0 0
    %397 = vmatprep.subr.bf16.mxu0 0
    %398 = vmatpush1.bf16.msra.mxu0 0
    %399 = vmatprep.subr.bf16.mxu0 0
    %400 = vmatpush1.bf16.msra.mxu0 0
    %401 = vmatprep.subr.bf16.mxu0 0
    %402 = vmatpush1.bf16.msra.mxu0 0
    %403 = vmatprep.subr.bf16.mxu0 0
    %404 = vmatpush1.bf16.msra.mxu0 0
    %405 = vmatprep.subr.bf16.mxu0 0
    %406 = vmatpush1.bf16.msra.mxu0 0
    %407 = vmatprep.subr.bf16.mxu0 0
    %408 = vmatpush1.bf16.msra.mxu0 0
    %409 = vmatprep.mubr.bf16.mxu0 0
    %410 = vmatmul.mubr.bf16.gmra.mrb[0].mxu0 %v376
    %v411 = vpop.f32.mrb[0].mxu0
    %v412 = vadd.f32 0.0, %v411
    %v413 = vpop.f32.mrb[0].mxu0
    %v414 = vpop.f32.mrb[0].mxu0
    %v415 = vpop.f32.mrb[0].mxu0
    %416 = vdwg.mxu0
    %v417 = vadd.f32 %v203, %v412
    %v418 = vtanh.pop %v417
    %v419 = vpack.c.bf16 %v418, %v418
    %420 = vmatprep.subr.bf16.mxu0 0
    %421 = vmatpush1.bf16.msra.mxu0 %v275
    %422 = vmatprep.subr.bf16.mxu0 0
    %423 = vmatpush1.bf16.msra.mxu0 %v276
    %424 = vmatprep.subr.bf16.mxu0 0
    %425 = vmatpush1.bf16.msra.mxu0 %v277
    %426 = vmatprep.subr.bf16.mxu0 0
    %427 = vmatpush1.bf16.msra.mxu0 %v278
    %428 = vmatprep.subr.bf16.mxu0 0
    %429 = vmatpush1.bf16.msra.mxu0 %v279
    %430 = vmatprep.subr.bf16.mxu0 0
    %431 = vmatpush1.bf16.msra.mxu0 %v280
    %432 = vmatprep.subr.bf16.mxu0 0
    %433 = vmatpush1.bf16.msra.mxu0 %v281
    %434 = vmatprep.subr.bf16.mxu0 0
    %435 = vmatpush1.bf16.msra.mxu0 %v282
    %436 = vmatprep.subr.bf16.mxu0 0
    %437 = vmatpush1.bf16.msra.mxu0 0
    %438 = vmatprep.subr.bf16.mxu0 0
    %439 = vmatpush1.bf16.msra.mxu0 0
    %440 = vmatprep.subr.bf16.mxu0 0
    %441 = vmatpush1.bf16.msra.mxu0 0
    %442 = vmatprep.subr.bf16.mxu0 0
    %443 = vmatpush1.bf16.msra.mxu0 0
    %444 = vmatprep.subr.bf16.mxu0 0
    %445 = vmatpush1.bf16.msra.mxu0 0
    %446 = vmatprep.subr.bf16.mxu0 0
    %447 = vmatpush1.bf16.msra.mxu0 0
    %448 = vmatprep.subr.bf16.mxu0 0
    %449 = vmatpush1.bf16.msra.mxu0 0
    %450 = vmatprep.subr.bf16.mxu0 0
    %451 = vmatpush1.bf16.msra.mxu0 0
    %452 = vmatprep.mubr.bf16.mxu0 0
    %453 = vmatmul.mubr.bf16.gmra.mrb[0].mxu0 %v419
    %v454 = vpop.f32.mrb[0].mxu0
    %v455 = vadd.f32 0.0, %v454
    %v456 = vpop.f32.mrb[0].mxu0
    %v457 = vpop.f32.mrb[0].mxu0
    %v458 = vpop.f32.mrb[0].mxu0
    %459 = vdwg.mxu0
    %v460 = vadd.f32 %v206, %v455
    %v461 = vtanh.pop %v460
    %v462 = vpack.c.bf16 %v461, %v461
    %463 = vmatprep.subr.bf16.mxu0 0
    %464 = vmatpush1.bf16.msra.mxu0 %v275
    %465 = vmatprep.subr.bf16.mxu0 0
    %466 = vmatpush1.bf16.msra.mxu0 %v276
    %467 = vmatprep.subr.bf16.mxu0 0
    %468 = vmatpush1.bf16.msra.mxu0 %v277
    %469 = vmatprep.subr.bf16.mxu0 0
    %470 = vmatpush1.bf16.msra.mxu0 %v278
    %471 = vmatprep.subr.bf16.mxu0 0
    %472 = vmatpush1.bf16.msra.mxu0 %v279
    %473 = vmatprep.subr.bf16.mxu0 0
    %474 = vmatpush1.bf16.msra.mxu0 %v280
    %475 = vmatprep.subr.bf16.mxu0 0
    %476 = vmatpush1.bf16.msra.mxu0 %v281
    %477 = vmatprep.subr.bf16.mxu0 0
    %478 = vmatpush1.bf16.msra.mxu0 %v282
    %479 = vmatprep.subr.bf16.mxu0 0
    %480 = vmatpush1.bf16.msra.mxu0 0
    %481 = vmatprep.subr.bf16.mxu0 0
    %482 = vmatpush1.bf16.msra.mxu0 0
    %483 = vmatprep.subr.bf16.mxu0 0
    %484 = vmatpush1.bf16.msra.mxu0 0
    %485 = vmatprep.subr.bf16.mxu0 0
    %486 = vmatpush1.bf16.msra.mxu0 0
    %487 = vmatprep.subr.bf16.mxu0 0
    %488 = vmatpush1.bf16.msra.mxu0 0
    %489 = vmatprep.subr.bf16.mxu0 0
    %490 = vmatpush1.bf16.msra.mxu0 0
    %491 = vmatprep.subr.bf16.mxu0 0
    %492 = vmatpush1.bf16.msra.mxu0 0
    %493 = vmatprep.subr.bf16.mxu0 0
    %494 = vmatpush1.bf16.msra.mxu0 0
    %495 = vmatprep.mubr.bf16.mxu0 0
    %496 = vmatmul.mubr.bf16.gmra.mrb[0].mxu0 %v462
    %v497 = vpop.f32.mrb[0].mxu0
    %v498 = vadd.f32 0.0, %v497
    %v499 = vpop.f32.mrb[0].mxu0
    %v500 = vpop.f32.mrb[0].mxu0
    %v501 = vpop.f32.mrb[0].mxu0
    %502 = vdwg.mxu0
    %v503 = vadd.f32 %v211, %v498
    %v504 = vtanh.pop %v503
    %v505 = vpack.c.bf16 %v504, %v504
    %506 = vmatprep.subr.bf16.mxu0 0
    %507 = vmatpush1.bf16.msra.mxu0 %v275
    %508 = vmatprep.subr.bf16.mxu0 0
    %509 = vmatpush1.bf16.msra.mxu0 %v276
    %510 = vmatprep.subr.bf16.mxu0 0
    %511 = vmatpush1.bf16.msra.mxu0 %v277
    %512 = vmatprep.subr.bf16.mxu0 0
    %513 = vmatpush1.bf16.msra.mxu0 %v278
    %514 = vmatprep.subr.bf16.mxu0 0
    %515 = vmatpush1.bf16.msra.mxu0 %v279
    %516 = vmatprep.subr.bf16.mxu0 0
    %517 = vmatpush1.bf16.msra.mxu0 %v280
    %518 = vmatprep.subr.bf16.mxu0 0
    %519 = vmatpush1.bf16.msra.mxu0 %v281
    %520 = vmatprep.subr.bf16.mxu0 0
    %521 = vmatpush1.bf16.msra.mxu0 %v282
    %522 = vmatprep.subr.bf16.mxu0 0
    %523 = vmatpush1.bf16.msra.mxu0 0
    %524 = vmatprep.subr.bf16.mxu0 0
    %525 = vmatpush1.bf16.msra.mxu0 0
    %526 = vmatprep.subr.bf16.mxu0 0
    %527 = vmatpush1.bf16.msra.mxu0 0
    %528 = vmatprep.subr.bf16.mxu0 0
    %529 = vmatpush1.bf16.msra.mxu0 0
    %530 = vmatprep.subr.bf16.mxu0 0
    %531 = vmatpush1.bf16.msra.mxu0 0
    %532 = vmatprep.subr.bf16.mxu0 0
    %533 = vmatpush1.bf16.msra.mxu0 0
    %534 = vmatprep.subr.bf16.mxu0 0
    %535 = vmatpush1.bf16.msra.mxu0 0
    %536 = vmatprep.subr.bf16.mxu0 0
    %537 = vmatpush1.bf16.msra.mxu0 0
    %538 = vmatprep.mubr.bf16.mxu0 0
    %539 = vmatmul.mubr.bf16.gmra.mrb[0].mxu0 %v505
    %v540 = vpop.f32.mrb[0].mxu0
    %v541 = vadd.f32 0.0, %v540
    %v542 = vpop.f32.mrb[0].mxu0
    %v543 = vpop.f32.mrb[0].mxu0
    %v544 = vpop.f32.mrb[0].mxu0
    %545 = vdwg.mxu0
    %v546 = vadd.f32 %v214, %v541
    %v547 = vtanh.pop %v546
    %v548 = vpack.c.bf16 %v547, %v547
    %549 = vmatprep.subr.bf16.mxu0 0
    %550 = vmatpush1.bf16.msra.mxu0 %v275
    %551 = vmatprep.subr.bf16.mxu0 0
    %552 = vmatpush1.bf16.msra.mxu0 %v276
    %553 = vmatprep.subr.bf16.mxu0 0
    %554 = vmatpush1.bf16.msra.mxu0 %v277
    %555 = vmatprep.subr.bf16.mxu0 0
    %556 = vmatpush1.bf16.msra.mxu0 %v278
    %557 = vmatprep.subr.bf16.mxu0 0
    %558 = vmatpush1.bf16.msra.mxu0 %v279
    %559 = vmatprep.subr.bf16.mxu0 0
    %560 = vmatpush1.bf16.msra.mxu0 %v280
    %561 = vmatprep.subr.bf16.mxu0 0
    %562 = vmatpush1.bf16.msra.mxu0 %v281
    %563 = vmatprep.subr.bf16.mxu0 0
    %564 = vmatpush1.bf16.msra.mxu0 %v282
    %565 = vmatprep.subr.bf16.mxu0 0
    %566 = vmatpush1.bf16.msra.mxu0 0
    %567 = vmatprep.subr.bf16.mxu0 0
    %568 = vmatpush1.bf16.msra.mxu0 0
    %569 = vmatprep.subr.bf16.mxu0 0
    %570 = vmatpush1.bf16.msra.mxu0 0
    %571 = vmatprep.subr.bf16.mxu0 0
    %572 = vmatpush1.bf16.msra.mxu0 0
    %573 = vmatprep.subr.bf16.mxu0 0
    %574 = vmatpush1.bf16.msra.mxu0 0
    %575 = vmatprep.subr.bf16.mxu0 0
    %576 = vmatpush1.bf16.msra.mxu0 0
    %577 = vmatprep.subr.bf16.mxu0 0
    %578 = vmatpush1.bf16.msra.mxu0 0
    %579 = vmatprep.subr.bf16.mxu0 0
    %580 = vmatpush1.bf16.msra.mxu0 0
    %581 = vmatprep.mubr.bf16.mxu0 0
    %582 = vmatmul.mubr.bf16.gmra.mrb[0].mxu0 %v548
    %v583 = vpop.f32.mrb[0].mxu0
    %v584 = vadd.f32 0.0, %v583
    %v585 = vpop.f32.mrb[0].mxu0
    %v586 = vpop.f32.mrb[0].mxu0
    %v587 = vpop.f32.mrb[0].mxu0
    %588 = vdwg.mxu0
    %v589 = vadd.f32 %v219, %v584
    %v590 = vtanh.pop %v589
    %v591 = vpack.c.bf16 %v590, %v590
    %592 = vmatprep.subr.bf16.mxu0 0
    %593 = vmatpush1.bf16.msra.mxu0 %v275
    %594 = vmatprep.subr.bf16.mxu0 0
    %595 = vmatpush1.bf16.msra.mxu0 %v276
    %596 = vmatprep.subr.bf16.mxu0 0
    %597 = vmatpush1.bf16.msra.mxu0 %v277
    %598 = vmatprep.subr.bf16.mxu0 0
    %599 = vmatpush1.bf16.msra.mxu0 %v278
    %600 = vmatprep.subr.bf16.mxu0 0
    %601 = vmatpush1.bf16.msra.mxu0 %v279
    %602 = vmatprep.subr.bf16.mxu0 0
    %603 = vmatpush1.bf16.msra.mxu0 %v280
    %604 = vmatprep.subr.bf16.mxu0 0
    %605 = vmatpush1.bf16.msra.mxu0 %v281
    %606 = vmatprep.subr.bf16.mxu0 0
    %607 = vmatpush1.bf16.msra.mxu0 %v282
    %608 = vmatprep.subr.bf16.mxu0 0
    %609 = vmatpush1.bf16.msra.mxu0 0
    %610 = vmatprep.subr.bf16.mxu0 0
    %611 = vmatpush1.bf16.msra.mxu0 0
    %612 = vmatprep.subr.bf16.mxu0 0
    %613 = vmatpush1.bf16.msra.mxu0 0
    %614 = vmatprep.subr.bf16.mxu0 0
    %615 = vmatpush1.bf16.msra.mxu0 0
    %616 = vmatprep.subr.bf16.mxu0 0
    %617 = vmatpush1.bf16.msra.mxu0 0
    %618 = vmatprep.subr.bf16.mxu0 0
    %619 = vmatpush1.bf16.msra.mxu0 0
    %620 = vmatprep.subr.bf16.mxu0 0
    %621 = vmatpush1.bf16.msra.mxu0 0
    %622 = vmatprep.subr.bf16.mxu0 0
    %623 = vmatpush1.bf16.msra.mxu0 0
    %624 = vmatprep.mubr.bf16.mxu0 0
    %625 = vmatmul.mubr.bf16.gmra.mrb[0].mxu0 %v591
    %v626 = vpop.f32.mrb[0].mxu0
    %v627 = vadd.f32 0.0, %v626
    %v628 = vpop.f32.mrb[0].mxu0
    %v629 = vpop.f32.mrb[0].mxu0
    %v630 = vpop.f32.mrb[0].mxu0
    %631 = vdwg.mxu0
    %v632 = vadd.f32 %v222, %v627
    %v633 = vtanh.pop %v632
    %634 = vst [vmem:[#allocation2] sm:$0xff] %v633
    // Predicated region
    $region38: #{rnn_regression_forward.1} parent=1 // pred_check
      %p635 = pneg %p52
    $region39: #{rnn_regression_forward.1} parent=1 // pred_check_branch
      %637 = sbr.rel (%p635) target = $region41
    $region40: #{rnn_regression_forward.1} parent=1 // pred_region
      %v638 = vpack.c.bf16 %v633, %v633
      %v639 = vld [vmem:[#allocation5] sm:$0xf]
      %v640 = vld [vmem:[#allocation5 + $0x4] sm:$0xf]
      %v641 = vld [vmem:[#allocation5 + $0x8] sm:$0xf]
      %v642 = vld [vmem:[#allocation5 + $0xc] sm:$0xf]
      %v643 = vld [vmem:[#allocation5 + $0x10] sm:$0xf]
      %v644 = vld [vmem:[#allocation5 + $0x14] sm:$0xf]
      %v645 = vld [vmem:[#allocation5 + $0x18] sm:$0xf]
      %v646 = vld [vmem:[#allocation5 + $0x1c] sm:$0xf]
      %v647 = vld [vmem:[#allocation5 + $0x20] sm:$0xf]
      %v648 = vld [vmem:[#allocation5 + $0x24] sm:$0xf]
      %v649 = vld [vmem:[#allocation5 + $0x28] sm:$0xf]
      %v650 = vld [vmem:[#allocation5 + $0x2c] sm:$0xf]
      %v651 = vld [vmem:[#allocation5 + $0x30] sm:$0xf]
      %v652 = vld [vmem:[#allocation5 + $0x34] sm:$0xf]
      %v653 = vld [vmem:[#allocation5 + $0x38] sm:$0xf]
      %v654 = vld [vmem:[#allocation5 + $0x3c] sm:$0xf]
      %v655 = vld [vmem:[%s5] sm:$0x1]
      %v657 = vlaneseq
      %v658 = vshrl.u32 %v657, 7
      %v659 = vsub.s32 0, %v658
      %v660 = vrot.slane %v655, %v659
      %v678 = vunpack.c.l.b16 %v639
      %v679 = vunpack.c.l.b16 %v640
      %v680 = vunpack.c.l.b16 %v641
      %v681 = vunpack.c.l.b16 %v642
      %v682 = vunpack.c.l.b16 %v643
      %v683 = vunpack.c.l.b16 %v644
      %v684 = vunpack.c.l.b16 %v645
      %v685 = vunpack.c.l.b16 %v646
      %v686 = vunpack.c.l.b16 %v647
      %v687 = vunpack.c.l.b16 %v648
      %v688 = vunpack.c.l.b16 %v649
      %v689 = vunpack.c.l.b16 %v650
      %v690 = vunpack.c.l.b16 %v651
      %v691 = vunpack.c.l.b16 %v652
      %v692 = vunpack.c.l.b16 %v653
      %v693 = vunpack.c.l.b16 %v654
      %v694 = vpack.c.b16 %v679, %v678
      %v695 = vpack.c.b16 %v681, %v680
      %v696 = vpack.c.b16 %v683, %v682
      %v697 = vpack.c.b16 %v685, %v684
      %v698 = vpack.c.b16 %v687, %v686
      %v699 = vpack.c.b16 %v689, %v688
      %v700 = vpack.c.b16 %v691, %v690
      %v701 = vpack.c.b16 %v693, %v692
      %710 = vmatprep.subr.bf16.mxu0 0
      %711 = vmatpush1.bf16.msra.mxu0 %v694
      %712 = vmatprep.subr.bf16.mxu0 0
      %713 = vmatpush1.bf16.msra.mxu0 %v695
      %714 = vmatprep.subr.bf16.mxu0 0
      %715 = vmatpush1.bf16.msra.mxu0 %v696
      %716 = vmatprep.subr.bf16.mxu0 0
      %717 = vmatpush1.bf16.msra.mxu0 %v697
      %718 = vmatprep.subr.bf16.mxu0 0
      %719 = vmatpush1.bf16.msra.mxu0 %v698
      %720 = vmatprep.subr.bf16.mxu0 0
      %721 = vmatpush1.bf16.msra.mxu0 %v699
      %722 = vmatprep.subr.bf16.mxu0 0
      %723 = vmatpush1.bf16.msra.mxu0 %v700
      %724 = vmatprep.subr.bf16.mxu0 0
      %725 = vmatpush1.bf16.msra.mxu0 %v701
      %726 = vmatprep.subr.bf16.mxu0 0
      %727 = vmatpush1.bf16.msra.mxu0 0
      %728 = vmatprep.subr.bf16.mxu0 0
      %729 = vmatpush1.bf16.msra.mxu0 0
      %730 = vmatprep.subr.bf16.mxu0 0
      %731 = vmatpush1.bf16.msra.mxu0 0
      %732 = vmatprep.subr.bf16.mxu0 0
      %733 = vmatpush1.bf16.msra.mxu0 0
      %734 = vmatprep.subr.bf16.mxu0 0
      %735 = vmatpush1.bf16.msra.mxu0 0
      %736 = vmatprep.subr.bf16.mxu0 0
      %737 = vmatpush1.bf16.msra.mxu0 0
      %738 = vmatprep.subr.bf16.mxu0 0
      %739 = vmatpush1.bf16.msra.mxu0 0
      %740 = vmatprep.subr.bf16.mxu0 0
      %741 = vmatpush1.bf16.msra.mxu0 0
      %742 = vmatprep.mubr.bf16.mxu0 0
      %743 = vmatmul.mubr.bf16.gmra.mrb[0].mxu0 %v638
      %v744 = vpop.f32.mrb[0].mxu0
      %v745 = vadd.f32 %v660, %v744
      %v746 = vpop.f32.mrb[0].mxu0
      %v747 = vpop.f32.mrb[0].mxu0
      %v748 = vpop.f32.mrb[0].mxu0
      %749 = vdwg.mxu0
      %750 = vst [vmem:[%s6] sm:$0xff] %v745
    $region41: #{rnn_regression_forward.1} parent=1 // pred_fallthru
      _
    // Predicated region
    $region42: #{rnn_regression_forward.1} parent=1 // pred_check
      _
    $region43: #{rnn_regression_forward.1} parent=1 // pred_check_branch
      %752 = sbr.rel (0) target = $region45
    $region44: #{rnn_regression_forward.1} parent=1 // pred_region
      _
    $region45: #{rnn_regression_forward.1} parent=1 // pred_fallthru
      _
    // Predicated region
    $region46: #{rnn_regression_forward.1} parent=1 // pred_check
      _
    $region47: #{rnn_regression_forward.1} parent=1 // pred_check_branch
      %754 = sbr.rel (0) target = $region49
    $region48: #{rnn_regression_forward.1} parent=1 // pred_region
      _
    $region49: #{rnn_regression_forward.1} parent=1 // pred_fallthru
      _
    %755 = vsyncpa [#allocation4], 1
    %756 = vsyncpa [#allocation6], 1

</llo_original>
